<compile_context>
chip_gen: v7x
topology: tpu7x:2x2x1
jax: 0.10.0
libtpu: 0.0.40
codegen_flags: <defaults>
</compile_context>

<pallas_src>
import jax
import jax.numpy as jnp
import numpy as np
from jax import lax
from jax.experimental import pallas as pl
from jax.experimental.pallas import tpu as pltpu

CONV_K = 7
CONV_STRIDE = 2
CONV_PAD = 3
POOL_K = 3
POOL_STRIDE = 2
POOL_PAD = 1
BN_EPS = 1e-5

LANE = 128                      # pad Cout (=64) up to the TPU lane width
VMEM_LIMIT = 32 * 1024 * 1024   # safe cap on all generations at these shapes


def _round_up(x, m):
    return (x + m - 1) // m * m


# --------------------------------------------------------------------------
# Fused stem kernel: conv(7x7/s2) + BN + ReLU + maxpool(3x3/s2), one image
# per grid step.
# --------------------------------------------------------------------------
def _stem_fused_kernel(r0_ref, r1_ref, w_ref, b_ref, o_ref, hz_ref, wz_ref):
    # r0_ref: (1, ROWS0, KTAP) bf16  even input rows, kw-expanded, row-flattened
    # r1_ref: (1, ROWS1, KTAP) bf16  odd  input rows, likewise
    # w_ref : (7, KTAP, CP)    bf16  BN-scale-folded weights, one slab per kh
    # b_ref : (1, CP)          f32   folded BN bias (zero in padded channels)
    # o_ref : (1, PH, PW, CP)  f32   pooled output
    # hz_ref: (OH+1, OW, CP)   f32   conv plane + 1 zero top-pad row (pool H stage)
    # wz_ref: (PH, OW+8, CP)   f32   row-maxed plane + 8-col zero left rim (pool W)
    OH = hz_ref.shape[0] - 1
    OW = hz_ref.shape[1]
    CP = hz_ref.shape[2]
    PH, PW = o_ref.shape[1], o_ref.shape[2]
    M = OH * OW

    # ---- 7x7/s2 conv as 7 kh-shifted matmuls (no im2col matrix in HBM) ------
    acc = None
    for kh in range(CONV_K):
        src = (r1_ref if (kh % 2) else r0_ref).at[0]     # zero-cost ref view
        off = (kh // 2) * OW                             # static row offset
        lhs = src[pl.ds(off, M), :]                      # (M, KTAP) contiguous
        d = jnp.dot(lhs, w_ref[kh], preferred_element_type=jnp.float32)
        acc = d if acc is None else acc + d              # (M, CP) f32

    # ---- BN bias + ReLU (BN scale already folded into the weights) ----------
    z = jnp.maximum(acc + b_ref[...], 0.0)               # (M, CP) f32, >= 0

    # ---- separable 3x3/s2 maxpool, entirely in VMEM --------------------------
    # Zero padding == PyTorch's -inf padding ONLY because z is post-ReLU (>= 0)
    # and padded channels carry bias 0 (so they stay exactly 0 through the max).
    hz_ref[0] = jnp.zeros((OW, CP), jnp.float32)         # 1-row top rim only
    hz_ref[pl.ds(1, OH)] = z.reshape(OH, OW, CP)         # leading-dim store
    rm = jnp.maximum(
        jnp.maximum(hz_ref[pl.ds(0, PH, stride=POOL_STRIDE)],
                    hz_ref[pl.ds(1, PH, stride=POOL_STRIDE)]),
        hz_ref[pl.ds(2, PH, stride=POOL_STRIDE)])        # (PH, OW, CP)

    # W pass: 8-column (sublane-aligned) zero left rim, data stored at offset 8
    # -> only aligned stores; the three taps are strided loads at starts 7/8/9.
    wz_ref[:, pl.ds(0, 8), :] = jnp.zeros((PH, 8, CP), jnp.float32)
    wz_ref[:, pl.ds(8, OW), :] = rm
    out = jnp.maximum(
        jnp.maximum(wz_ref[:, pl.ds(7, PW, stride=POOL_STRIDE), :],
                    wz_ref[:, pl.ds(8, PW, stride=POOL_STRIDE), :]),
        wz_ref[:, pl.ds(9, PW, stride=POOL_STRIDE), :])  # (PH, PW, CP)
    o_ref[0] = out.astype(o_ref.dtype)


# --------------------------------------------------------------------------
# Wrapper: parameter folding + cheap kw-expansion in plain JAX, one fused
# pallas_call for the whole stem.
# --------------------------------------------------------------------------
def thermal_module_forward(x_nchw, params):
    w = params["conv1_w"]                        # (Cout, Cin, 7, 7) OIHW
    cout, cin = w.shape[0], w.shape[1]
    cp = _round_up(cout, LANE)                   # lane-dense output channels
    ktap = _round_up(CONV_K * cin, 8)            # per-kh contraction width

    # BN (eval, running stats) folded into weights + bias.
    scale = params["bn1_gamma"] / jnp.sqrt(params["bn1_var"] + BN_EPS)
    bias = params["bn1_beta"] - params["bn1_mean"] * scale

    N, _, H, W = x_nchw.shape
    OH = (H + 2 * CONV_PAD - CONV_K) // CONV_STRIDE + 1
    OW = (W + 2 * CONV_PAD - CONV_K) // CONV_STRIDE + 1
    PH = (OH + 2 * POOL_PAD - POOL_K) // POOL_STRIDE + 1
    PW = (OW + 2 * POOL_PAD - POOL_K) // POOL_STRIDE + 1
    assert OH % 2 == 0 and OW % 2 == 0 and OW % 8 == 0, (
        "fused stem kernel assumes even conv-output size and OW % 8 == 0 "
        "(holds for the 16x16 test and 224x224 ImageNet inputs)")

    # NCHW -> NHWC bf16, spatial pad, kw-expansion (only ~3.5x the raw input).
    x = jnp.transpose(x_nchw, (0, 2, 3, 1)).astype(jnp.bfloat16)
    xp = jnp.pad(x, ((0, 0), (CONV_PAD, CONV_PAD), (CONV_PAD, CONV_PAD), (0, 0)))
    hp = xp.shape[1]
    cols = [xp[:, :, kw:kw + CONV_STRIDE * OW:CONV_STRIDE, :]
            for kw in range(CONV_K)]                       # each (N, hp, OW, cin)
    r = jnp.stack(cols, axis=3).reshape(N, hp, OW, CONV_K * cin)
    r = jnp.pad(r, ((0, 0), (0, 0), (0, 0), (0, ktap - CONV_K * cin)))
    # Split input rows by parity and flatten (row, ow) so each kh tap is a
    # contiguous row-slice inside the kernel (no in-kernel relayout needed).
    r0 = r[:, 0::2].reshape(N, -1, ktap)                   # even rows
    r1 = r[:, 1::2].reshape(N, -1, ktap)                   # odd rows
    rows0, rows1 = r0.shape[1], r1.shape[1]

    # Weights: fold BN scale, regroup as (kh, kw*cin + c, cout), pad K and Cout.
    w_f = (w * scale[:, None, None, None]).astype(jnp.float32)
    w_k = jnp.transpose(w_f, (2, 3, 1, 0)).reshape(CONV_K, CONV_K * cin, cout)
    w_k = jnp.pad(w_k, ((0, 0), (0, ktap - CONV_K * cin), (0, cp - cout)))
    w_k = w_k.astype(jnp.bfloat16)
    # Padded channels must keep bias 0 so they stay exactly 0 through the pool.
    bias_row = jnp.pad(bias, (0, cp - cout)).reshape(1, cp).astype(jnp.float32)

    pooled = pl.pallas_call(
        _stem_fused_kernel,
        out_shape=jax.ShapeDtypeStruct((N, PH, PW, cp), jnp.float32),
        grid=(N,),
        in_specs=[
            pl.BlockSpec((1, rows0, ktap), lambda n: (n, 0, 0)),    # streamed
            pl.BlockSpec((1, rows1, ktap), lambda n: (n, 0, 0)),    # streamed
            pl.BlockSpec((CONV_K, ktap, cp), lambda n: (0, 0, 0)),  # resident
            pl.BlockSpec((1, cp), lambda n: (0, 0)),                # resident
        ],
        out_specs=pl.BlockSpec((1, PH, PW, cp), lambda n: (n, 0, 0, 0)),
        scratch_shapes=[
            pltpu.VMEM((OH + 1, OW, cp), jnp.float32),   # pool H staging
            pltpu.VMEM((PH, OW + 8, cp), jnp.float32),   # pool W staging
        ],
        compiler_params=pltpu.CompilerParams(
            dimension_semantics=("parallel",),
            vmem_limit_bytes=VMEM_LIMIT),
    )(r0, r1, w_k, bias_row)

    out = pooled[..., :cout]                     # drop zero channel padding
    return jnp.transpose(out, (0, 3, 1, 2))      # NHWC -> NCHW


# --------------------------------------------------------------------------
# Deterministic parameter init (resnet50 stem shapes: conv1 + bn1)
# --------------------------------------------------------------------------
def init_params(key, cin=3, cout=64):
    k1, k2, k3, k4, k5 = jax.random.split(key, 5)
    return dict(
        conv1_w=jax.random.normal(k1, (cout, cin, CONV_K, CONV_K),
                                  jnp.float32) * 0.05,
        bn1_gamma=1.0 + 0.1 * jax.random.normal(k2, (cout,), jnp.float32),
        bn1_beta=0.1 * jax.random.normal(k3, (cout,), jnp.float32),
        bn1_mean=0.1 * jax.random.normal(k4, (cout,), jnp.float32),
        bn1_var=jax.random.uniform(k5, (cout,), jnp.float32, 0.5, 1.5),
    )


# --------------------------------------------------------------------------
# Pure-JAX f32 reference for verification
# --------------------------------------------------------------------------
def reference_forward(x_nchw, params):
    conv = lax.conv_general_dilated(
        x_nchw, params["conv1_w"], window_strides=(CONV_STRIDE, CONV_STRIDE),
        padding=((CONV_PAD, CONV_PAD), (CONV_PAD, CONV_PAD)),
        dimension_numbers=("NCHW", "OIHW", "NCHW"))
    scale = params["bn1_gamma"] / jnp.sqrt(params["bn1_var"] + BN_EPS)
    bias = params["bn1_beta"] - params["bn1_mean"] * scale
    y = jnp.maximum(conv * scale[None, :, None, None]
                    + bias[None, :, None, None], 0.0)
    return lax.reduce_window(
        y, -jnp.inf, lax.max,
        (1, 1, POOL_K, POOL_K), (1, 1, POOL_STRIDE, POOL_STRIDE),
        padding=((0, 0), (0, 0), (POOL_PAD, POOL_PAD), (POOL_PAD, POOL_PAD)))


if __name__ == "__main__":
    key = jax.random.PRNGKey(0)
    kx, kp = jax.random.split(key)
    # NCHW input, like the PyTorch module (resnet50 conv1 expects 3 channels).
    x = jax.random.normal(kx, (2, 3, 16, 16), jnp.float32)
    params = init_params(kp)

    out = jax.jit(thermal_module_forward)(x, params)
    out = jax.block_until_ready(out)

    ref = reference_forward(x, params)
    # Inputs/weights are streamed in bf16 (f32 MXU accumulation), so compare
    # to the f32 reference with a tolerance covering bf16 quantization.
    np.testing.assert_allclose(np.asarray(out), np.asarray(ref),
                               rtol=2e-2, atol=2e-2)
    assert out.shape == (2, 64, 4, 4)
    print("KERNEL_OK")
</pallas_src>

<mosaic_0001>
module attributes {stable_mosaic.version = 11 : i64} {
  func.func @_stem_fused_kernel(%arg0: i32, %arg1: memref<1x88x24xbf16, #tpu.memory_space<vmem>>, %arg2: memref<1x88x24xbf16, #tpu.memory_space<vmem>>, %arg3: memref<7x24x128xbf16, #tpu.memory_space<vmem>>, %arg4: memref<1x128xf32, #tpu.memory_space<vmem>>, %arg5: memref<1x4x4x128xf32, #tpu.memory_space<vmem>>, %arg6: memref<9x8x128xf32, #tpu.memory_space<vmem>>, %arg7: memref<4x16x128xf32, #tpu.memory_space<vmem>>) attributes {dimension_semantics = [#tpu.dimension_semantics<parallel>], iteration_bounds = array<i64: 2>, scalar_prefetch = 0 : i64, scratch_operands = 2 : i64, tpu.core_type = #tpu.core_type<tc>, window_params = [{transform_indices = @transform_0, window_bounds = array<i64: 1, 88, 24>}, {transform_indices = @transform_1, window_bounds = array<i64: 1, 88, 24>}, {pipeline_mode = #tpu.pipeline_mode<synchronous>, transform_indices = @transform_2, window_bounds = array<i64: 7, 24, 128>}, {pipeline_mode = #tpu.pipeline_mode<synchronous>, transform_indices = @transform_3, window_bounds = array<i64: 1, 128>}, {transform_indices = @transform_4, window_bounds = array<i64: 1, 4, 4, 128>}]} {
    %c0_i32 = arith.constant 0 : i32
    %c0_i32_0 = arith.constant 0 : i32
    %c0_i32_1 = arith.constant 0 : i32
    %0 = tpu.memref_slice %arg1[%c0_i32, %c0_i32_0, %c0_i32_1] : memref<1x88x24xbf16, #tpu.memory_space<vmem>> -> memref<1x88x24xbf16, #tpu.memory_space<vmem>>
    %1 = tpu.memref_squeeze %0 : memref<1x88x24xbf16, #tpu.memory_space<vmem>> -> memref<88x24xbf16, #tpu.memory_space<vmem>>
    %c0 = arith.constant 0 : index
    %c0_2 = arith.constant 0 : index
    %2 = vector.load %1[%c0, %c0_2] : memref<88x24xbf16, #tpu.memory_space<vmem>>, vector<64x24xbf16>
    %c0_3 = arith.constant 0 : index
    %c0_4 = arith.constant 0 : index
    %c0_5 = arith.constant 0 : index
    %3 = vector.load %arg3[%c0_3, %c0_4, %c0_5] : memref<7x24x128xbf16, #tpu.memory_space<vmem>>, vector<1x24x128xbf16>
    %4 = vector.shape_cast %3 : vector<1x24x128xbf16> to vector<24x128xbf16>
    %cst = arith.constant dense<0.000000e+00> : vector<64x128xf32>
    %5 = tpu.matmul %2, %4, %cst {dimension_numbers = #tpu.dot_dimension_numbers<[1], [0], [0], [1], [0, 0, 1, 1], [], []>} : vector<64x24xbf16>, vector<24x128xbf16>, vector<64x128xf32> -> vector<64x128xf32>
    %c0_i32_6 = arith.constant 0 : i32
    %c0_i32_7 = arith.constant 0 : i32
    %c0_i32_8 = arith.constant 0 : i32
    %6 = tpu.memref_slice %arg2[%c0_i32_6, %c0_i32_7, %c0_i32_8] : memref<1x88x24xbf16, #tpu.memory_space<vmem>> -> memref<1x88x24xbf16, #tpu.memory_space<vmem>>
    %7 = tpu.memref_squeeze %6 : memref<1x88x24xbf16, #tpu.memory_space<vmem>> -> memref<88x24xbf16, #tpu.memory_space<vmem>>
    %c0_9 = arith.constant 0 : index
    %c0_10 = arith.constant 0 : index
    %8 = vector.load %7[%c0_9, %c0_10] : memref<88x24xbf16, #tpu.memory_space<vmem>>, vector<64x24xbf16>
    %c1 = arith.constant 1 : index
    %c0_11 = arith.constant 0 : index
    %c0_12 = arith.constant 0 : index
    %9 = vector.load %arg3[%c1, %c0_11, %c0_12] : memref<7x24x128xbf16, #tpu.memory_space<vmem>>, vector<1x24x128xbf16>
    %10 = vector.shape_cast %9 : vector<1x24x128xbf16> to vector<24x128xbf16>
    %cst_13 = arith.constant dense<0.000000e+00> : vector<64x128xf32>
    %11 = tpu.matmul %8, %10, %cst_13 {dimension_numbers = #tpu.dot_dimension_numbers<[1], [0], [0], [1], [0, 0, 1, 1], [], []>} : vector<64x24xbf16>, vector<24x128xbf16>, vector<64x128xf32> -> vector<64x128xf32>
    %12 = arith.addf %5, %11 : vector<64x128xf32>
    %c0_i32_14 = arith.constant 0 : i32
    %c0_i32_15 = arith.constant 0 : i32
    %c0_i32_16 = arith.constant 0 : i32
    %13 = tpu.memref_slice %arg1[%c0_i32_14, %c0_i32_15, %c0_i32_16] : memref<1x88x24xbf16, #tpu.memory_space<vmem>> -> memref<1x88x24xbf16, #tpu.memory_space<vmem>>
    %14 = tpu.memref_squeeze %13 : memref<1x88x24xbf16, #tpu.memory_space<vmem>> -> memref<88x24xbf16, #tpu.memory_space<vmem>>
    %c8 = arith.constant 8 : index
    %c0_17 = arith.constant 0 : index
    %15 = vector.load %14[%c8, %c0_17] : memref<88x24xbf16, #tpu.memory_space<vmem>>, vector<64x24xbf16>
    %c2 = arith.constant 2 : index
    %c0_18 = arith.constant 0 : index
    %c0_19 = arith.constant 0 : index
    %16 = vector.load %arg3[%c2, %c0_18, %c0_19] : memref<7x24x128xbf16, #tpu.memory_space<vmem>>, vector<1x24x128xbf16>
    %17 = vector.shape_cast %16 : vector<1x24x128xbf16> to vector<24x128xbf16>
    %cst_20 = arith.constant dense<0.000000e+00> : vector<64x128xf32>
    %18 = tpu.matmul %15, %17, %cst_20 {dimension_numbers = #tpu.dot_dimension_numbers<[1], [0], [0], [1], [0, 0, 1, 1], [], []>} : vector<64x24xbf16>, vector<24x128xbf16>, vector<64x128xf32> -> vector<64x128xf32>
    %19 = arith.addf %12, %18 : vector<64x128xf32>
    %c0_i32_21 = arith.constant 0 : i32
    %c0_i32_22 = arith.constant 0 : i32
    %c0_i32_23 = arith.constant 0 : i32
    %20 = tpu.memref_slice %arg2[%c0_i32_21, %c0_i32_22, %c0_i32_23] : memref<1x88x24xbf16, #tpu.memory_space<vmem>> -> memref<1x88x24xbf16, #tpu.memory_space<vmem>>
    %21 = tpu.memref_squeeze %20 : memref<1x88x24xbf16, #tpu.memory_space<vmem>> -> memref<88x24xbf16, #tpu.memory_space<vmem>>
    %c8_24 = arith.constant 8 : index
    %c0_25 = arith.constant 0 : index
    %22 = vector.load %21[%c8_24, %c0_25] : memref<88x24xbf16, #tpu.memory_space<vmem>>, vector<64x24xbf16>
    %c3 = arith.constant 3 : index
    %c0_26 = arith.constant 0 : index
    %c0_27 = arith.constant 0 : index
    %23 = vector.load %arg3[%c3, %c0_26, %c0_27] : memref<7x24x128xbf16, #tpu.memory_space<vmem>>, vector<1x24x128xbf16>
    %24 = vector.shape_cast %23 : vector<1x24x128xbf16> to vector<24x128xbf16>
    %cst_28 = arith.constant dense<0.000000e+00> : vector<64x128xf32>
    %25 = tpu.matmul %22, %24, %cst_28 {dimension_numbers = #tpu.dot_dimension_numbers<[1], [0], [0], [1], [0, 0, 1, 1], [], []>} : vector<64x24xbf16>, vector<24x128xbf16>, vector<64x128xf32> -> vector<64x128xf32>
    %26 = arith.addf %19, %25 : vector<64x128xf32>
    %c0_i32_29 = arith.constant 0 : i32
    %c0_i32_30 = arith.constant 0 : i32
    %c0_i32_31 = arith.constant 0 : i32
    %27 = tpu.memref_slice %arg1[%c0_i32_29, %c0_i32_30, %c0_i32_31] : memref<1x88x24xbf16, #tpu.memory_space<vmem>> -> memref<1x88x24xbf16, #tpu.memory_space<vmem>>
    %28 = tpu.memref_squeeze %27 : memref<1x88x24xbf16, #tpu.memory_space<vmem>> -> memref<88x24xbf16, #tpu.memory_space<vmem>>
    %c16 = arith.constant 16 : index
    %c0_32 = arith.constant 0 : index
    %29 = vector.load %28[%c16, %c0_32] : memref<88x24xbf16, #tpu.memory_space<vmem>>, vector<64x24xbf16>
    %c4 = arith.constant 4 : index
    %c0_33 = arith.constant 0 : index
    %c0_34 = arith.constant 0 : index
    %30 = vector.load %arg3[%c4, %c0_33, %c0_34] : memref<7x24x128xbf16, #tpu.memory_space<vmem>>, vector<1x24x128xbf16>
    %31 = vector.shape_cast %30 : vector<1x24x128xbf16> to vector<24x128xbf16>
    %cst_35 = arith.constant dense<0.000000e+00> : vector<64x128xf32>
    %32 = tpu.matmul %29, %31, %cst_35 {dimension_numbers = #tpu.dot_dimension_numbers<[1], [0], [0], [1], [0, 0, 1, 1], [], []>} : vector<64x24xbf16>, vector<24x128xbf16>, vector<64x128xf32> -> vector<64x128xf32>
    %33 = arith.addf %26, %32 : vector<64x128xf32>
    %c0_i32_36 = arith.constant 0 : i32
    %c0_i32_37 = arith.constant 0 : i32
    %c0_i32_38 = arith.constant 0 : i32
    %34 = tpu.memref_slice %arg2[%c0_i32_36, %c0_i32_37, %c0_i32_38] : memref<1x88x24xbf16, #tpu.memory_space<vmem>> -> memref<1x88x24xbf16, #tpu.memory_space<vmem>>
    %35 = tpu.memref_squeeze %34 : memref<1x88x24xbf16, #tpu.memory_space<vmem>> -> memref<88x24xbf16, #tpu.memory_space<vmem>>
    %c16_39 = arith.constant 16 : index
    %c0_40 = arith.constant 0 : index
    %36 = vector.load %35[%c16_39, %c0_40] : memref<88x24xbf16, #tpu.memory_space<vmem>>, vector<64x24xbf16>
    %c5 = arith.constant 5 : index
    %c0_41 = arith.constant 0 : index
    %c0_42 = arith.constant 0 : index
    %37 = vector.load %arg3[%c5, %c0_41, %c0_42] : memref<7x24x128xbf16, #tpu.memory_space<vmem>>, vector<1x24x128xbf16>
    %38 = vector.shape_cast %37 : vector<1x24x128xbf16> to vector<24x128xbf16>
    %cst_43 = arith.constant dense<0.000000e+00> : vector<64x128xf32>
    %39 = tpu.matmul %36, %38, %cst_43 {dimension_numbers = #tpu.dot_dimension_numbers<[1], [0], [0], [1], [0, 0, 1, 1], [], []>} : vector<64x24xbf16>, vector<24x128xbf16>, vector<64x128xf32> -> vector<64x128xf32>
    %40 = arith.addf %33, %39 : vector<64x128xf32>
    %c0_i32_44 = arith.constant 0 : i32
    %c0_i32_45 = arith.constant 0 : i32
    %c0_i32_46 = arith.constant 0 : i32
    %41 = tpu.memref_slice %arg1[%c0_i32_44, %c0_i32_45, %c0_i32_46] : memref<1x88x24xbf16, #tpu.memory_space<vmem>> -> memref<1x88x24xbf16, #tpu.memory_space<vmem>>
    %42 = tpu.memref_squeeze %41 : memref<1x88x24xbf16, #tpu.memory_space<vmem>> -> memref<88x24xbf16, #tpu.memory_space<vmem>>
    %c24 = arith.constant 24 : index
    %c0_47 = arith.constant 0 : index
    %43 = vector.load %42[%c24, %c0_47] : memref<88x24xbf16, #tpu.memory_space<vmem>>, vector<64x24xbf16>
    %c6 = arith.constant 6 : index
    %c0_48 = arith.constant 0 : index
    %c0_49 = arith.constant 0 : index
    %44 = vector.load %arg3[%c6, %c0_48, %c0_49] : memref<7x24x128xbf16, #tpu.memory_space<vmem>>, vector<1x24x128xbf16>
    %45 = vector.shape_cast %44 : vector<1x24x128xbf16> to vector<24x128xbf16>
    %cst_50 = arith.constant dense<0.000000e+00> : vector<64x128xf32>
    %46 = tpu.matmul %43, %45, %cst_50 {dimension_numbers = #tpu.dot_dimension_numbers<[1], [0], [0], [1], [0, 0, 1, 1], [], []>} : vector<64x24xbf16>, vector<24x128xbf16>, vector<64x128xf32> -> vector<64x128xf32>
    %47 = arith.addf %40, %46 : vector<64x128xf32>
    %c0_51 = arith.constant 0 : index
    %c0_52 = arith.constant 0 : index
    %48 = vector.load %arg4[%c0_51, %c0_52] : memref<1x128xf32, #tpu.memory_space<vmem>>, vector<1x128xf32>
    %49 = vector.broadcast %48 : vector<1x128xf32> to vector<64x128xf32>
    %50 = arith.addf %47, %49 : vector<64x128xf32>
    %cst_53 = arith.constant 0.000000e+00 : f32
    %51 = vector.broadcast %cst_53 : f32 to vector<64x128xf32>
    %52 = arith.maximumf %50, %51 : vector<64x128xf32>
    %cst_54 = arith.constant 0.000000e+00 : f32
    %53 = vector.broadcast %cst_54 : f32 to vector<8x128xf32>
    %c0_55 = arith.constant 0 : index
    %c0_56 = arith.constant 0 : index
    %c0_57 = arith.constant 0 : index
    %54 = vector.load %arg6[%c0_55, %c0_56, %c0_57] : memref<9x8x128xf32, #tpu.memory_space<vmem>>, vector<1x8x128xf32>
    %55 = vector.shape_cast %54 : vector<1x8x128xf32> to vector<8x128xf32>
    %56 = vector.shape_cast %53 : vector<8x128xf32> to vector<1x8x128xf32>
    tpu.vector_store %arg6[%c0_55, %c0_56, %c0_57], %56 {strides = array<i32>} : memref<9x8x128xf32, #tpu.memory_space<vmem>>, vector<1x8x128xf32>,
    %57 = vector.shape_cast %52 : vector<64x128xf32> to vector<8x8x128xf32>
    %c1_58 = arith.constant 1 : index
    %c0_59 = arith.constant 0 : index
    %c0_60 = arith.constant 0 : index
    %58 = vector.load %arg6[%c1_58, %c0_59, %c0_60] : memref<9x8x128xf32, #tpu.memory_space<vmem>>, vector<8x8x128xf32>
    tpu.vector_store %arg6[%c1_58, %c0_59, %c0_60], %57 {strides = array<i32>} : memref<9x8x128xf32, #tpu.memory_space<vmem>>, vector<8x8x128xf32>,
    %c0_61 = arith.constant 0 : index
    %c0_62 = arith.constant 0 : index
    %c0_63 = arith.constant 0 : index
    %59 = tpu.strided_load %arg6[%c0_61, %c0_62, %c0_63] {strides = array<i32: 2, 1, 1>} : memref<9x8x128xf32, #tpu.memory_space<vmem>>, vector<4x8x128xf32>
    %c1_64 = arith.constant 1 : index
    %c0_65 = arith.constant 0 : index
    %c0_66 = arith.constant 0 : index
    %60 = tpu.strided_load %arg6[%c1_64, %c0_65, %c0_66] {strides = array<i32: 2, 1, 1>} : memref<9x8x128xf32, #tpu.memory_space<vmem>>, vector<4x8x128xf32>
    %61 = arith.maximumf %59, %60 : vector<4x8x128xf32>
    %c2_67 = arith.constant 2 : index
    %c0_68 = arith.constant 0 : index
    %c0_69 = arith.constant 0 : index
    %62 = tpu.strided_load %arg6[%c2_67, %c0_68, %c0_69] {strides = array<i32: 2, 1, 1>} : memref<9x8x128xf32, #tpu.memory_space<vmem>>, vector<4x8x128xf32>
    %63 = arith.maximumf %61, %62 : vector<4x8x128xf32>
    %cst_70 = arith.constant 0.000000e+00 : f32
    %64 = vector.broadcast %cst_70 : f32 to vector<4x8x128xf32>
    %c0_71 = arith.constant 0 : index
    %c0_72 = arith.constant 0 : index
    %c0_73 = arith.constant 0 : index
    %65 = vector.load %arg7[%c0_71, %c0_72, %c0_73] : memref<4x16x128xf32, #tpu.memory_space<vmem>>, vector<4x8x128xf32>
    tpu.vector_store %arg7[%c0_71, %c0_72, %c0_73], %64 {strides = array<i32>} : memref<4x16x128xf32, #tpu.memory_space<vmem>>, vector<4x8x128xf32>,
    %c0_74 = arith.constant 0 : index
    %c8_75 = arith.constant 8 : index
    %c0_76 = arith.constant 0 : index
    %66 = vector.load %arg7[%c0_74, %c8_75, %c0_76] : memref<4x16x128xf32, #tpu.memory_space<vmem>>, vector<4x8x128xf32>
    tpu.vector_store %arg7[%c0_74, %c8_75, %c0_76], %63 {strides = array<i32>} : memref<4x16x128xf32, #tpu.memory_space<vmem>>, vector<4x8x128xf32>,
    %c0_77 = arith.constant 0 : index
    %c7 = arith.constant 7 : index
    %c0_78 = arith.constant 0 : index
    %67 = tpu.strided_load %arg7[%c0_77, %c7, %c0_78] {strides = array<i32: 1, 2, 1>} : memref<4x16x128xf32, #tpu.memory_space<vmem>>, vector<4x4x128xf32>
    %c0_79 = arith.constant 0 : index
    %c8_80 = arith.constant 8 : index
    %c0_81 = arith.constant 0 : index
    %68 = tpu.strided_load %arg7[%c0_79, %c8_80, %c0_81] {strides = array<i32: 1, 2, 1>} : memref<4x16x128xf32, #tpu.memory_space<vmem>>, vector<4x4x128xf32>
    %69 = arith.maximumf %67, %68 : vector<4x4x128xf32>
    %c0_82 = arith.constant 0 : index
    %c9 = arith.constant 9 : index
    %c0_83 = arith.constant 0 : index
    %70 = tpu.strided_load %arg7[%c0_82, %c9, %c0_83] {strides = array<i32: 1, 2, 1>} : memref<4x16x128xf32, #tpu.memory_space<vmem>>, vector<4x4x128xf32>
    %71 = arith.maximumf %69, %70 : vector<4x4x128xf32>
    %c0_84 = arith.constant 0 : index
    %c0_85 = arith.constant 0 : index
    %c0_86 = arith.constant 0 : index
    %c0_87 = arith.constant 0 : index
    %72 = vector.load %arg5[%c0_84, %c0_85, %c0_86, %c0_87] : memref<1x4x4x128xf32, #tpu.memory_space<vmem>>, vector<1x4x4x128xf32>
    %73 = vector.shape_cast %72 : vector<1x4x4x128xf32> to vector<4x4x128xf32>
    %74 = vector.shape_cast %71 : vector<4x4x128xf32> to vector<1x4x4x128xf32>
    tpu.vector_store %arg5[%c0_84, %c0_85, %c0_86, %c0_87], %74 {strides = array<i32>} : memref<1x4x4x128xf32, #tpu.memory_space<vmem>>, vector<1x4x4x128xf32>,
    return
  }
  func.func @transform_0(%arg0: i32) -> (i32, i32, i32) {
    %c0_i32 = arith.constant 0 : i32
    %c0_i32_0 = arith.constant 0 : i32
    %c0_i32_1 = arith.constant 0 : i32
    return %arg0, %c0_i32, %c0_i32_0 : i32, i32, i32
  }
  func.func @transform_1(%arg0: i32) -> (i32, i32, i32) {
    %c0_i32 = arith.constant 0 : i32
    %c0_i32_0 = arith.constant 0 : i32
    %c0_i32_1 = arith.constant 0 : i32
    return %arg0, %c0_i32, %c0_i32_0 : i32, i32, i32
  }
  func.func @transform_2(%arg0: i32) -> (i32, i32, i32) {
    %c0_i32 = arith.constant 0 : i32
    %c0_i32_0 = arith.constant 0 : i32
    %c0_i32_1 = arith.constant 0 : i32
    %c0_i32_2 = arith.constant 0 : i32
    return %c0_i32, %c0_i32_0, %c0_i32_1 : i32, i32, i32
  }
  func.func @transform_3(%arg0: i32) -> (i32, i32) {
    %c0_i32 = arith.constant 0 : i32
    %c0_i32_0 = arith.constant 0 : i32
    %c0_i32_1 = arith.constant 0 : i32
    return %c0_i32, %c0_i32_0 : i32, i32
  }
  func.func @transform_4(%arg0: i32) -> (i32, i32, i32, i32) {
    %c0_i32 = arith.constant 0 : i32
    %c0_i32_0 = arith.constant 0 : i32
    %c0_i32_1 = arith.constant 0 : i32
    %c0_i32_2 = arith.constant 0 : i32
    return %arg0, %c0_i32, %c0_i32_0, %c0_i32_1 : i32, i32, i32, i32
  }
}

</mosaic_0001>

<llo_original>
// kernel: thermal_module_forward.1
$region0: #{thermal_module_forward.1}
  #allocation0 [shape = 'u32[]', space=smem, size = 0x4, offset = 0x4, fixed_abs, tag = 'smem constant byte address 0x4 - core index']
  #allocation1 [shape = 'u32[144,128]{1,0:T(1,128)}', space=vmem, size = 0x12000, scoped, tag = 'internal scratch']
  #allocation2 [shape = 'f32[9,8,128]{2,1,0:T(8,128)}', space=vmem, size = 0x9000, scoped, tag = 'scratch operand']
  #allocation3 [shape = 'f32[4,16,128]{2,1,0:T(8,128)}', space=vmem, size = 0x8000, scoped, tag = 'scratch operand']
  %s0 = inlined_call_operand.vmem [shape: bf16[2,88,24], index: 0, kind: input, shape index: {}]
  %s1 = inlined_call_operand.vmem [shape: bf16[2,88,24], index: 1, kind: input, shape index: {}]
  %s2 = inlined_call_operand.vmem [shape: bf16[7,24,128], index: 2, kind: input, shape index: {}]
  %s3 = inlined_call_operand.vmem [shape: f32[1,128], index: 3, kind: input, shape index: {}]
  %s4 = inlined_call_operand.vmem [shape: f32[2,4,4,128], index: 4, kind: output, shape index: {}]
  %s5 = sld [smem:[#allocation0]]
  $region49: #{thermal_module_forward.1} parent=0
    _
  %s7 = ssub.s32 1, %s5
  %s8 = scalar_select 0, %s7, %s5
  loop: start=0, step=1, limit=4
  $region2: #{thermal_module_forward.1} parent=0 // loop_pre_header
    _
  $region3: #{thermal_module_forward.1} parent=0 // loop_header
    %s10 = sphi 0, %s14
    %p11 = scmp.ge.s32.totalorder %s10, 4
    %s20 = sphi 0, %s22
    %s23 = sphi 0, %s20
    %s24 = sphi 0, %s23
    %s40 = sphi 0, %s24
    %s46 = sphi 0, %s48
    %s49 = sphi 0, %s46
    %s50 = sphi 0, %s49
    %s66 = sphi 0, %s50
    %s70 = sphi 0, %s70
    %s72 = sphi 0, %s70
    %s73 = sphi 0, %s72
    %s87 = sphi 0, %s73
    %s91 = sphi 0, %s91
    %s93 = sphi 0, %s91
    %s94 = sphi 0, %s93
    %s108 = sphi 0, %s94
    %s114 = sphi 0, %s116
    %s117 = sphi 0, %s114
    %s118 = sphi 0, %s117
    %s134 = sphi 0, %s118
  $region4: #{thermal_module_forward.1} parent=0 // loop_header_branch
    %13 = sbr.rel (%p11) target = $region8
  $region5: #{thermal_module_forward.1} parent=0 // loop_body
    %s15 = ssub.s32 %s10, 1
    %s16 = ssub.s32 %s10, 2
    %s17 = sadd.s32 %s10, 1
    %s18 = ssub.s32 %s10, %s17
    %p19 = scmp.eq.s32.totalorder %s18, 0
    %s21 = sadd.s32 %s20, 1
    %s22 = scalar_select %p19, %s20, %s21
    %p25 = pneg %p19
    %p26 = scmp.eq.s32.totalorder %s10, 1
    %p27 = por %p25, %p26
    %p28 = scmp.ne.s32.totalorder %s20, %s23
    %p29 = scmp.eq.s32.totalorder %s10, 0
    %p30 = por %p28, %p29
    %p31 = scmp.ne.s32.totalorder %s20, %s23
    %p32 = scmp.eq.s32.totalorder %s15, 1
    %p33 = por %p31, %p32
    %p34 = scmp.ne.s32.totalorder %s23, %s24
    %p35 = scmp.eq.s32.totalorder %s15, 0
    %p36 = por %p34, %p35
    %p37 = scmp.ne.s32.totalorder %s23, %s24
    %p38 = scmp.eq.s32.totalorder %s16, 1
    %p39 = por %p37, %p38
    %p41 = scmp.ne.s32.totalorder %s24, %s40
    %p42 = scmp.eq.s32.totalorder %s16, 0
    %p43 = por %p41, %p42
    %s44 = ssub.s32 %s10, %s17
    %p45 = scmp.eq.s32.totalorder %s44, 0
    %s47 = sadd.s32 %s46, 1
    %s48 = scalar_select %p45, %s46, %s47
    %p51 = pneg %p45
    %p52 = scmp.eq.s32.totalorder %s10, 1
    %p53 = por %p51, %p52
    %p54 = scmp.ne.s32.totalorder %s46, %s49
    %p55 = scmp.eq.s32.totalorder %s10, 0
    %p56 = por %p54, %p55
    %p57 = scmp.ne.s32.totalorder %s46, %s49
    %p58 = scmp.eq.s32.totalorder %s15, 1
    %p59 = por %p57, %p58
    %p60 = scmp.ne.s32.totalorder %s49, %s50
    %p61 = scmp.eq.s32.totalorder %s15, 0
    %p62 = por %p60, %p61
    %p63 = scmp.ne.s32.totalorder %s49, %s50
    %p64 = scmp.eq.s32.totalorder %s16, 1
    %p65 = por %p63, %p64
    %p67 = scmp.ne.s32.totalorder %s50, %s66
    %p68 = scmp.eq.s32.totalorder %s16, 0
    %p69 = por %p67, %p68
    %s71 = sadd.s32 %s70, 1
    %p74 = scmp.eq.s32.totalorder %s10, 1
    %p75 = scmp.ne.s32.totalorder %s70, %s72
    %p76 = scmp.eq.s32.totalorder %s10, 0
    %p77 = por %p75, %p76
    %p78 = scmp.ne.s32.totalorder %s70, %s72
    %p79 = scmp.eq.s32.totalorder %s15, 1
    %p80 = por %p78, %p79
    %p81 = scmp.ne.s32.totalorder %s72, %s73
    %p82 = scmp.eq.s32.totalorder %s15, 0
    %p83 = por %p81, %p82
    %p84 = scmp.ne.s32.totalorder %s72, %s73
    %p85 = scmp.eq.s32.totalorder %s16, 1
    %p86 = por %p84, %p85
    %p88 = scmp.ne.s32.totalorder %s73, %s87
    %p89 = scmp.eq.s32.totalorder %s16, 0
    %p90 = por %p88, %p89
    %s92 = sadd.s32 %s91, 1
    %p95 = scmp.eq.s32.totalorder %s10, 1
    %p96 = scmp.ne.s32.totalorder %s91, %s93
    %p97 = scmp.eq.s32.totalorder %s10, 0
    %p98 = por %p96, %p97
    %p99 = scmp.ne.s32.totalorder %s91, %s93
    %p100 = scmp.eq.s32.totalorder %s15, 1
    %p101 = por %p99, %p100
    %p102 = scmp.ne.s32.totalorder %s93, %s94
    %p103 = scmp.eq.s32.totalorder %s15, 0
    %p104 = por %p102, %p103
    %p105 = scmp.ne.s32.totalorder %s93, %s94
    %p106 = scmp.eq.s32.totalorder %s16, 1
    %p107 = por %p105, %p106
    %p109 = scmp.ne.s32.totalorder %s94, %s108
    %p110 = scmp.eq.s32.totalorder %s16, 0
    %p111 = por %p109, %p110
    %s112 = ssub.s32 %s10, %s17
    %p113 = scmp.eq.s32.totalorder %s112, 0
    %s115 = sadd.s32 %s114, 1
    %s116 = scalar_select %p113, %s114, %s115
    %p119 = pneg %p113
    %p120 = scmp.eq.s32.totalorder %s10, 1
    %p121 = por %p119, %p120
    %p122 = scmp.ne.s32.totalorder %s114, %s117
    %p123 = scmp.eq.s32.totalorder %s10, 0
    %p124 = por %p122, %p123
    %p125 = scmp.ne.s32.totalorder %s114, %s117
    %p126 = scmp.eq.s32.totalorder %s15, 1
    %p127 = por %p125, %p126
    %p128 = scmp.ne.s32.totalorder %s117, %s118
    %p129 = scmp.eq.s32.totalorder %s15, 0
    %p130 = por %p128, %p129
    %p131 = scmp.ne.s32.totalorder %s117, %s118
    %p132 = scmp.eq.s32.totalorder %s16, 1
    %p133 = por %p131, %p132
    %p135 = scmp.ne.s32.totalorder %s118, %s134
    %p136 = scmp.eq.s32.totalorder %s16, 0
    %p137 = por %p135, %p136
    %p138 = scmp.le.s32.totalorder 1, %s10
    %p139 = scmp.lt.s32.totalorder %s10, 3
    %p140 = pnand %p138, %p139
    %p141 = pneg %p140
    // Predicated region
    $region9: #{thermal_module_forward.1} parent=5 // pred_check
      _
    $region10: #{thermal_module_forward.1} parent=5 // pred_check_branch
      %143 = sbr.rel (%p140) target = $region12
    $region11: #{thermal_module_forward.1} parent=5 // pred_region
      %s144 = ssub.s32 %s10, 1
      // Predicated region
      $region13: #{thermal_module_forward.1} parent=11 // pred_check
        %p145 = pneg %p83
      $region14: #{thermal_module_forward.1} parent=11 // pred_check_branch
        %147 = sbr.rel (%p145) target = $region16
      $region15: #{thermal_module_forward.1} parent=11 // pred_region
        _
      $region16: #{thermal_module_forward.1} parent=11 // pred_fallthru
        _
      // Predicated region
      $region17: #{thermal_module_forward.1} parent=11 // pred_check
        %p148 = pneg %p104
      $region18: #{thermal_module_forward.1} parent=11 // pred_check_branch
        %150 = sbr.rel (%p148) target = $region20
      $region19: #{thermal_module_forward.1} parent=11 // pred_region
        _
      $region20: #{thermal_module_forward.1} parent=11 // pred_fallthru
        _
    $region12: #{thermal_module_forward.1} parent=5 // pred_fallthru
      _
    %p151 = scmp.lt.s32.totalorder %s10, 2
    // Predicated region
    $region21: #{thermal_module_forward.1} parent=5 // pred_check
      %p152 = pneg %p151
    $region22: #{thermal_module_forward.1} parent=5 // pred_check_branch
      %154 = sbr.rel (%p152) target = $region24
    $region23: #{thermal_module_forward.1} parent=5 // pred_region
      // Predicated region
      $region25: #{thermal_module_forward.1} parent=23 // pred_check
        %p155 = pneg %p30
      $region26: #{thermal_module_forward.1} parent=23 // pred_check_branch
        %157 = sbr.rel (%p155) target = $region28
      $region27: #{thermal_module_forward.1} parent=23 // pred_region
        %p158 = scmp.lt.s32.totalorder %s10, 1
        %s159 = scalar_select %p158, %s10, 1
        %s160 = smul.addr %s159, 11
        %s161 = smul.addr %s160, 4
        %s162 = scalar_lea.vmem %s0, %s161
      $region28: #{thermal_module_forward.1} parent=23 // pred_fallthru
        _
      // Predicated region
      $region29: #{thermal_module_forward.1} parent=23 // pred_check
        %p163 = pneg %p56
      $region30: #{thermal_module_forward.1} parent=23 // pred_check_branch
        %165 = sbr.rel (%p163) target = $region32
      $region31: #{thermal_module_forward.1} parent=23 // pred_region
        %p166 = scmp.lt.s32.totalorder %s10, 1
        %s167 = scalar_select %p166, %s10, 1
        %s168 = smul.addr %s167, 11
        %s169 = smul.addr %s168, 4
        %s170 = scalar_lea.vmem %s1, %s169
      $region32: #{thermal_module_forward.1} parent=23 // pred_fallthru
        _
    $region24: #{thermal_module_forward.1} parent=5 // pred_fallthru
      _
    %p171 = scmp.le.s32.totalorder 1, %s10
    %p172 = scmp.lt.s32.totalorder %s10, 3
    %p173 = pnand %p171, %p172
    %p174 = pneg %p173
    // Predicated region
    $region33: #{thermal_module_forward.1} parent=5 // pred_check
      _
    $region34: #{thermal_module_forward.1} parent=5 // pred_check_branch
      %176 = sbr.rel (%p173) target = $region36
    $region35: #{thermal_module_forward.1} parent=5 // pred_region
      %s177 = ssub.s32 %s10, 1
      %p178 = scmp.lt.s32.totalorder %s15, 1
      %s179 = scalar_select %p178, %s15, 1
      %s180 = smul.addr %s179, 11
      %s181 = smul.addr %s180, 4
      %s182 = scalar_lea.vmem %s0, %s181
      %p183 = pneg %p36
      %p184 = pneg %p33
      %p185 = scmp.lt.s32.totalorder %s15, 1
      %s186 = scalar_select %p185, %s15, 1
      %s187 = smul.addr %s186, 11
      %s188 = smul.addr %s187, 4
      %s189 = scalar_lea.vmem %s1, %s188
      %p190 = pneg %p62
      %p191 = pneg %p59
      %p192 = pneg %p83
      %p193 = pneg %p80
      %p194 = pneg %p104
      %p195 = pneg %p101
      %p196 = pneg %p130
      %p197 = pneg %p127
      %p198 = scmp.lt.s32.totalorder %s15, 1
      %s199 = scalar_select %p198, %s15, 1
      %s200 = smul.addr %s199, 4
      %s201 = smul.addr %s200, 4
      %s202 = scalar_lea.vmem %s4, %s201
      %p203 = scmp.lt.s32.totalorder %s15, 1
      %s204 = scalar_select %p203, %s15, 1
      %s205 = smul.addr %s204, 11
      %s206 = smul.addr %s205, 4
      %s207 = scalar_lea.vmem %s0, %s206
      %p208 = scmp.lt.s32.totalorder %s15, 1
      %s209 = scalar_select %p208, %s15, 1
      %s210 = smul.addr %s209, 11
      %s211 = smul.addr %s210, 4
      %s212 = scalar_lea.vmem %s1, %s211
      %p213 = scmp.lt.s32.totalorder %s15, 1
      %s214 = scalar_select %p213, %s15, 1
      %s215 = smul.addr %s214, 4
      %s216 = smul.addr %s215, 4
      %s217 = scalar_lea.vmem %s4, %s216
      %v219 = vld [vmem:[%s207] sm:$0xf]
      %v220 = vld [vmem:[%s207 + $0x4] sm:$0xf]
      %v221 = vld [vmem:[%s207 + $0x8] sm:$0xf]
      %v222 = vld [vmem:[%s207 + $0xc] sm:$0xf]
      %v223 = vld [vmem:[%s207 + $0x10] sm:$0xf]
      %v224 = vld [vmem:[%s207 + $0x14] sm:$0xf]
      %v225 = vld [vmem:[%s207 + $0x18] sm:$0xf]
      %v226 = vld [vmem:[%s207 + $0x1c] sm:$0xf]
      %v227 = vld [vmem:[%s2] sm:$0xf]
      %v228 = vld [vmem:[%s2 + $0x4] sm:$0xf]
      %v229 = vld [vmem:[%s2 + $0x8] sm:$0xf]
      %v230 = vld [vmem:[%s212] sm:$0xf]
      %v231 = vld [vmem:[%s212 + $0x4] sm:$0xf]
      %v232 = vld [vmem:[%s212 + $0x8] sm:$0xf]
      %v233 = vld [vmem:[%s212 + $0xc] sm:$0xf]
      %v234 = vld [vmem:[%s212 + $0x10] sm:$0xf]
      %v235 = vld [vmem:[%s212 + $0x14] sm:$0xf]
      %v236 = vld [vmem:[%s212 + $0x18] sm:$0xf]
      %v237 = vld [vmem:[%s212 + $0x1c] sm:$0xf]
      %s238 = scalar_lea.vmem %s2, 12
      %v239 = vld [vmem:[%s238] sm:$0xf]
      %v240 = vld [vmem:[%s238 + $0x4] sm:$0xf]
      %v241 = vld [vmem:[%s238 + $0x8] sm:$0xf]
      %v250 = vunpack.c.l.b16 %v230
      %v251 = vunpack.c.l.b16 %v231
      %v252 = vunpack.c.l.b16 %v232
      %v253 = vunpack.c.l.b16 %v233
      %v254 = vunpack.c.l.b16 %v234
      %v255 = vunpack.c.l.b16 %v235
      %v256 = vunpack.c.l.b16 %v236
      %v257 = vunpack.c.l.b16 %v237
      %v258 = vpack.c.b16 %v251, %v250
      %v259 = vpack.c.b16 %v253, %v252
      %v260 = vpack.c.b16 %v255, %v254
      %v261 = vpack.c.b16 %v257, %v256
      %v265 = vunpack.c.l.b16 %v239
      %v266 = vunpack.c.l.b16 %v240
      %v267 = vunpack.c.l.b16 %v241
      %v268 = vpack.c.b16 %v266, %v265
      %v269 = vpack.c.b16 %v267, %v267
      %vm271 = vcmask 195584
      %v273 = vsel %vm271, %v258, 0
      %v276 = vsel %vm271, %v259, 0
      %v279 = vsel %vm271, %v260, 0
      %v282 = vsel %vm271, %v261, 0
      %vm284 = vcmask 1043456
      %v286 = vsel %vm284, %v269, 0
      %288 = vmatprep.subr.bf16.mxu0 0
      %289 = vmatpush1.bf16.msra.mxu0 %v268
      %290 = vmatprep.subr.bf16.mxu0 0
      %291 = vmatpush1.bf16.msra.mxu0 %v286
      %292 = vmatprep.subr.bf16.mxu0 0
      %293 = vmatpush1.bf16.msra.mxu0 0
      %294 = vmatprep.subr.bf16.mxu0 0
      %295 = vmatpush1.bf16.msra.mxu0 0
      %296 = vmatprep.subr.bf16.mxu0 0
      %297 = vmatpush1.bf16.msra.mxu0 0
      %298 = vmatprep.subr.bf16.mxu0 0
      %299 = vmatpush1.bf16.msra.mxu0 0
      %300 = vmatprep.subr.bf16.mxu0 0
      %301 = vmatpush1.bf16.msra.mxu0 0
      %302 = vmatprep.subr.bf16.mxu0 0
      %303 = vmatpush1.bf16.msra.mxu0 0
      %304 = vmatprep.subr.bf16.mxu0 0
      %305 = vmatpush1.bf16.msra.mxu0 0
      %306 = vmatprep.subr.bf16.mxu0 0
      %307 = vmatpush1.bf16.msra.mxu0 0
      %308 = vmatprep.subr.bf16.mxu0 0
      %309 = vmatpush1.bf16.msra.mxu0 0
      %310 = vmatprep.subr.bf16.mxu0 0
      %311 = vmatpush1.bf16.msra.mxu0 0
      %312 = vmatprep.subr.bf16.mxu0 0
      %313 = vmatpush1.bf16.msra.mxu0 0
      %314 = vmatprep.subr.bf16.mxu0 0
      %315 = vmatpush1.bf16.msra.mxu0 0
      %316 = vmatprep.subr.bf16.mxu0 0
      %317 = vmatpush1.bf16.msra.mxu0 0
      %318 = vmatprep.subr.bf16.mxu0 0
      %319 = vmatpush1.bf16.msra.mxu0 0
      %320 = vmatprep.mubr.bf16.mxu0 0
      %321 = vmatmul.mubr.bf16.gmra.mrb[0].mxu0 %v273
      %v322 = vpop.f32.mrb[0].mxu0
      %v323 = vadd.f32 0.0, %v322
      %v324 = vpop.f32.mrb[0].mxu0
      %v325 = vpop.f32.mrb[0].mxu0
      %v326 = vadd.f32 0.0, %v325
      %v327 = vpop.f32.mrb[0].mxu0
      %328 = vmatprep.mubr.bf16.mxu0 0
      %329 = vmatmul.mubr.bf16.gmra.mrb[0].mxu0 %v276
      %v330 = vpop.f32.mrb[0].mxu0
      %v331 = vadd.f32 0.0, %v330
      %v332 = vpop.f32.mrb[0].mxu0
      %v333 = vpop.f32.mrb[0].mxu0
      %v334 = vadd.f32 0.0, %v333
      %v335 = vpop.f32.mrb[0].mxu0
      %336 = vmatprep.mubr.bf16.mxu0 0
      %337 = vmatmul.mubr.bf16.gmra.mrb[0].mxu0 %v279
      %v338 = vpop.f32.mrb[0].mxu0
      %v339 = vadd.f32 0.0, %v338
      %v340 = vpop.f32.mrb[0].mxu0
      %v341 = vpop.f32.mrb[0].mxu0
      %v342 = vadd.f32 0.0, %v341
      %v343 = vpop.f32.mrb[0].mxu0
      %344 = vmatprep.mubr.bf16.mxu0 0
      %345 = vmatmul.mubr.bf16.gmra.mrb[0].mxu0 %v282
      %v346 = vpop.f32.mrb[0].mxu0
      %v347 = vadd.f32 0.0, %v346
      %v348 = vpop.f32.mrb[0].mxu0
      %v349 = vpop.f32.mrb[0].mxu0
      %v350 = vadd.f32 0.0, %v349
      %v351 = vpop.f32.mrb[0].mxu0
      %352 = vdwg.mxu0
      %v361 = vunpack.c.l.b16 %v219
      %v362 = vunpack.c.l.b16 %v220
      %v363 = vunpack.c.l.b16 %v221
      %v364 = vunpack.c.l.b16 %v222
      %v365 = vunpack.c.l.b16 %v223
      %v366 = vunpack.c.l.b16 %v224
      %v367 = vunpack.c.l.b16 %v225
      %v368 = vunpack.c.l.b16 %v226
      %v369 = vpack.c.b16 %v362, %v361
      %v370 = vpack.c.b16 %v364, %v363
      %v371 = vpack.c.b16 %v366, %v365
      %v372 = vpack.c.b16 %v368, %v367
      %v376 = vunpack.c.l.b16 %v227
      %v377 = vunpack.c.l.b16 %v228
      %v378 = vunpack.c.l.b16 %v229
      %v379 = vpack.c.b16 %v377, %v376
      %v380 = vpack.c.b16 %v378, %v378
      %v383 = vsel %vm271, %v369, 0
      %v386 = vsel %vm271, %v370, 0
      %v389 = vsel %vm271, %v371, 0
      %v392 = vsel %vm271, %v372, 0
      %v395 = vsel %vm284, %v380, 0
      %397 = vmatprep.subr.bf16.mxu0 0
      %398 = vmatpush1.bf16.msra.mxu0 %v379
      %399 = vmatprep.subr.bf16.mxu0 0
      %400 = vmatpush1.bf16.msra.mxu0 %v395
      %401 = vmatprep.subr.bf16.mxu0 0
      %402 = vmatpush1.bf16.msra.mxu0 0
      %403 = vmatprep.subr.bf16.mxu0 0
      %404 = vmatpush1.bf16.msra.mxu0 0
      %405 = vmatprep.subr.bf16.mxu0 0
      %406 = vmatpush1.bf16.msra.mxu0 0
      %407 = vmatprep.subr.bf16.mxu0 0
      %408 = vmatpush1.bf16.msra.mxu0 0
      %409 = vmatprep.subr.bf16.mxu0 0
      %410 = vmatpush1.bf16.msra.mxu0 0
      %411 = vmatprep.subr.bf16.mxu0 0
      %412 = vmatpush1.bf16.msra.mxu0 0
      %413 = vmatprep.subr.bf16.mxu0 0
      %414 = vmatpush1.bf16.msra.mxu0 0
      %415 = vmatprep.subr.bf16.mxu0 0
      %416 = vmatpush1.bf16.msra.mxu0 0
      %417 = vmatprep.subr.bf16.mxu0 0
      %418 = vmatpush1.bf16.msra.mxu0 0
      %419 = vmatprep.subr.bf16.mxu0 0
      %420 = vmatpush1.bf16.msra.mxu0 0
      %421 = vmatprep.subr.bf16.mxu0 0
      %422 = vmatpush1.bf16.msra.mxu0 0
      %423 = vmatprep.subr.bf16.mxu0 0
      %424 = vmatpush1.bf16.msra.mxu0 0
      %425 = vmatprep.subr.bf16.mxu0 0
      %426 = vmatpush1.bf16.msra.mxu0 0
      %427 = vmatprep.subr.bf16.mxu0 0
      %428 = vmatpush1.bf16.msra.mxu0 0
      %429 = vmatprep.mubr.bf16.mxu0 0
      %430 = vmatmul.mubr.bf16.gmra.mrb[0].mxu0 %v383
      %v431 = vpop.f32.mrb[0].mxu0
      %v432 = vadd.f32 %v323, %v431
      %v433 = vpop.f32.mrb[0].mxu0
      %v434 = vpop.f32.mrb[0].mxu0
      %v435 = vadd.f32 %v326, %v434
      %v436 = vpop.f32.mrb[0].mxu0
      %437 = vmatprep.mubr.bf16.mxu0 0
      %438 = vmatmul.mubr.bf16.gmra.mrb[0].mxu0 %v386
      %v439 = vpop.f32.mrb[0].mxu0
      %v440 = vadd.f32 %v331, %v439
      %v441 = vpop.f32.mrb[0].mxu0
      %v442 = vpop.f32.mrb[0].mxu0
      %v443 = vadd.f32 %v334, %v442
      %v444 = vpop.f32.mrb[0].mxu0
      %445 = vmatprep.mubr.bf16.mxu0 0
      %446 = vmatmul.mubr.bf16.gmra.mrb[0].mxu0 %v389
      %v447 = vpop.f32.mrb[0].mxu0
      %v448 = vadd.f32 %v339, %v447
      %v449 = vpop.f32.mrb[0].mxu0
      %v450 = vpop.f32.mrb[0].mxu0
      %v451 = vadd.f32 %v342, %v450
      %v452 = vpop.f32.mrb[0].mxu0
      %453 = vmatprep.mubr.bf16.mxu0 0
      %454 = vmatmul.mubr.bf16.gmra.mrb[0].mxu0 %v392
      %v455 = vpop.f32.mrb[0].mxu0
      %v456 = vadd.f32 %v347, %v455
      %v457 = vpop.f32.mrb[0].mxu0
      %v458 = vpop.f32.mrb[0].mxu0
      %v459 = vadd.f32 %v350, %v458
      %v460 = vpop.f32.mrb[0].mxu0
      %461 = vdwg.mxu0
      %v462 = vld [vmem:[%s207 + $0x4] sm:$0xf]
      %v463 = vld [vmem:[%s207 + $0x8] sm:$0xf]
      %v464 = vld [vmem:[%s207 + $0xc] sm:$0xf]
      %v465 = vld [vmem:[%s207 + $0x10] sm:$0xf]
      %v466 = vld [vmem:[%s207 + $0x14] sm:$0xf]
      %v467 = vld [vmem:[%s207 + $0x18] sm:$0xf]
      %v468 = vld [vmem:[%s207 + $0x1c] sm:$0xf]
      %v469 = vld [vmem:[%s207 + $0x20] sm:$0xf]
      %s470 = scalar_lea.vmem %s2, 24
      %v471 = vld [vmem:[%s470] sm:$0xf]
      %v472 = vld [vmem:[%s470 + $0x4] sm:$0xf]
      %v473 = vld [vmem:[%s470 + $0x8] sm:$0xf]
      %v482 = vunpack.c.l.b16 %v462
      %v483 = vunpack.c.l.b16 %v463
      %v484 = vunpack.c.l.b16 %v464
      %v485 = vunpack.c.l.b16 %v465
      %v486 = vunpack.c.l.b16 %v466
      %v487 = vunpack.c.l.b16 %v467
      %v488 = vunpack.c.l.b16 %v468
      %v489 = vunpack.c.l.b16 %v469
      %v490 = vpack.c.b16 %v483, %v482
      %v491 = vpack.c.b16 %v485, %v484
      %v492 = vpack.c.b16 %v487, %v486
      %v493 = vpack.c.b16 %v489, %v488
      %v497 = vunpack.c.l.b16 %v471
      %v498 = vunpack.c.l.b16 %v472
      %v499 = vunpack.c.l.b16 %v473
      %v500 = vpack.c.b16 %v498, %v497
      %v501 = vpack.c.b16 %v499, %v499
      %v504 = vsel %vm271, %v490, 0
      %v507 = vsel %vm271, %v491, 0
      %v510 = vsel %vm271, %v492, 0
      %v513 = vsel %vm271, %v493, 0
      %v516 = vsel %vm284, %v501, 0
      %518 = vmatprep.subr.bf16.mxu0 0
      %519 = vmatpush1.bf16.msra.mxu0 %v500
      %520 = vmatprep.subr.bf16.mxu0 0
      %521 = vmatpush1.bf16.msra.mxu0 %v516
      %522 = vmatprep.subr.bf16.mxu0 0
      %523 = vmatpush1.bf16.msra.mxu0 0
      %524 = vmatprep.subr.bf16.mxu0 0
      %525 = vmatpush1.bf16.msra.mxu0 0
      %526 = vmatprep.subr.bf16.mxu0 0
      %527 = vmatpush1.bf16.msra.mxu0 0
      %528 = vmatprep.subr.bf16.mxu0 0
      %529 = vmatpush1.bf16.msra.mxu0 0
      %530 = vmatprep.subr.bf16.mxu0 0
      %531 = vmatpush1.bf16.msra.mxu0 0
      %532 = vmatprep.subr.bf16.mxu0 0
      %533 = vmatpush1.bf16.msra.mxu0 0
      %534 = vmatprep.subr.bf16.mxu0 0
      %535 = vmatpush1.bf16.msra.mxu0 0
      %536 = vmatprep.subr.bf16.mxu0 0
      %537 = vmatpush1.bf16.msra.mxu0 0
      %538 = vmatprep.subr.bf16.mxu0 0
      %539 = vmatpush1.bf16.msra.mxu0 0
      %540 = vmatprep.subr.bf16.mxu0 0
      %541 = vmatpush1.bf16.msra.mxu0 0
      %542 = vmatprep.subr.bf16.mxu0 0
      %543 = vmatpush1.bf16.msra.mxu0 0
      %544 = vmatprep.subr.bf16.mxu0 0
      %545 = vmatpush1.bf16.msra.mxu0 0
      %546 = vmatprep.subr.bf16.mxu0 0
      %547 = vmatpush1.bf16.msra.mxu0 0
      %548 = vmatprep.subr.bf16.mxu0 0
      %549 = vmatpush1.bf16.msra.mxu0 0
      %550 = vmatprep.mubr.bf16.mxu0 0
      %551 = vmatmul.mubr.bf16.gmra.mrb[0].mxu0 %v504
      %v552 = vpop.f32.mrb[0].mxu0
      %v553 = vadd.f32 0.0, %v552
      %v554 = vpop.f32.mrb[0].mxu0
      %v555 = vpop.f32.mrb[0].mxu0
      %v556 = vadd.f32 0.0, %v555
      %v557 = vpop.f32.mrb[0].mxu0
      %558 = vmatprep.mubr.bf16.mxu0 0
      %559 = vmatmul.mubr.bf16.gmra.mrb[0].mxu0 %v507
      %v560 = vpop.f32.mrb[0].mxu0
      %v561 = vadd.f32 0.0, %v560
      %v562 = vpop.f32.mrb[0].mxu0
      %v563 = vpop.f32.mrb[0].mxu0
      %v564 = vadd.f32 0.0, %v563
      %v565 = vpop.f32.mrb[0].mxu0
      %566 = vmatprep.mubr.bf16.mxu0 0
      %567 = vmatmul.mubr.bf16.gmra.mrb[0].mxu0 %v510
      %v568 = vpop.f32.mrb[0].mxu0
      %v569 = vadd.f32 0.0, %v568
      %v570 = vpop.f32.mrb[0].mxu0
      %v571 = vpop.f32.mrb[0].mxu0
      %v572 = vadd.f32 0.0, %v571
      %v573 = vpop.f32.mrb[0].mxu0
      %574 = vmatprep.mubr.bf16.mxu0 0
      %575 = vmatmul.mubr.bf16.gmra.mrb[0].mxu0 %v513
      %v576 = vpop.f32.mrb[0].mxu0
      %v577 = vadd.f32 0.0, %v576
      %v578 = vpop.f32.mrb[0].mxu0
      %v579 = vpop.f32.mrb[0].mxu0
      %v580 = vadd.f32 0.0, %v579
      %v581 = vpop.f32.mrb[0].mxu0
      %582 = vdwg.mxu0
      %v583 = vadd.f32 %v432, %v553
      %v584 = vadd.f32 %v435, %v556
      %v585 = vadd.f32 %v440, %v561
      %v586 = vadd.f32 %v443, %v564
      %v587 = vadd.f32 %v448, %v569
      %v588 = vadd.f32 %v451, %v572
      %v589 = vadd.f32 %v456, %v577
      %v590 = vadd.f32 %v459, %v580
      %v591 = vld [vmem:[%s212 + $0x4] sm:$0xf]
      %v592 = vld [vmem:[%s212 + $0x8] sm:$0xf]
      %v593 = vld [vmem:[%s212 + $0xc] sm:$0xf]
      %v594 = vld [vmem:[%s212 + $0x10] sm:$0xf]
      %v595 = vld [vmem:[%s212 + $0x14] sm:$0xf]
      %v596 = vld [vmem:[%s212 + $0x18] sm:$0xf]
      %v597 = vld [vmem:[%s212 + $0x1c] sm:$0xf]
      %v598 = vld [vmem:[%s212 + $0x20] sm:$0xf]
      %s599 = scalar_lea.vmem %s2, 36
      %v600 = vld [vmem:[%s599] sm:$0xf]
      %v601 = vld [vmem:[%s599 + $0x4] sm:$0xf]
      %v602 = vld [vmem:[%s599 + $0x8] sm:$0xf]
      %v611 = vunpack.c.l.b16 %v591
      %v612 = vunpack.c.l.b16 %v592
      %v613 = vunpack.c.l.b16 %v593
      %v614 = vunpack.c.l.b16 %v594
      %v615 = vunpack.c.l.b16 %v595
      %v616 = vunpack.c.l.b16 %v596
      %v617 = vunpack.c.l.b16 %v597
      %v618 = vunpack.c.l.b16 %v598
      %v619 = vpack.c.b16 %v612, %v611
      %v620 = vpack.c.b16 %v614, %v613
      %v621 = vpack.c.b16 %v616, %v615
      %v622 = vpack.c.b16 %v618, %v617
      %v626 = vunpack.c.l.b16 %v600
      %v627 = vunpack.c.l.b16 %v601
      %v628 = vunpack.c.l.b16 %v602
      %v629 = vpack.c.b16 %v627, %v626
      %v630 = vpack.c.b16 %v628, %v628
      %v633 = vsel %vm271, %v619, 0
      %v636 = vsel %vm271, %v620, 0
      %v639 = vsel %vm271, %v621, 0
      %v642 = vsel %vm271, %v622, 0
      %v645 = vsel %vm284, %v630, 0
      %647 = vmatprep.subr.bf16.mxu0 0
      %648 = vmatpush1.bf16.msra.mxu0 %v629
      %649 = vmatprep.subr.bf16.mxu0 0
      %650 = vmatpush1.bf16.msra.mxu0 %v645
      %651 = vmatprep.subr.bf16.mxu0 0
      %652 = vmatpush1.bf16.msra.mxu0 0
      %653 = vmatprep.subr.bf16.mxu0 0
      %654 = vmatpush1.bf16.msra.mxu0 0
      %655 = vmatprep.subr.bf16.mxu0 0
      %656 = vmatpush1.bf16.msra.mxu0 0
      %657 = vmatprep.subr.bf16.mxu0 0
      %658 = vmatpush1.bf16.msra.mxu0 0
      %659 = vmatprep.subr.bf16.mxu0 0
      %660 = vmatpush1.bf16.msra.mxu0 0
      %661 = vmatprep.subr.bf16.mxu0 0
      %662 = vmatpush1.bf16.msra.mxu0 0
      %663 = vmatprep.subr.bf16.mxu0 0
      %664 = vmatpush1.bf16.msra.mxu0 0
      %665 = vmatprep.subr.bf16.mxu0 0
      %666 = vmatpush1.bf16.msra.mxu0 0
      %667 = vmatprep.subr.bf16.mxu0 0
      %668 = vmatpush1.bf16.msra.mxu0 0
      %669 = vmatprep.subr.bf16.mxu0 0
      %670 = vmatpush1.bf16.msra.mxu0 0
      %671 = vmatprep.subr.bf16.mxu0 0
      %672 = vmatpush1.bf16.msra.mxu0 0
      %673 = vmatprep.subr.bf16.mxu0 0
      %674 = vmatpush1.bf16.msra.mxu0 0
      %675 = vmatprep.subr.bf16.mxu0 0
      %676 = vmatpush1.bf16.msra.mxu0 0
      %677 = vmatprep.subr.bf16.mxu0 0
      %678 = vmatpush1.bf16.msra.mxu0 0
      %679 = vmatprep.mubr.bf16.mxu0 0
      %680 = vmatmul.mubr.bf16.gmra.mrb[0].mxu0 %v633
      %v681 = vpop.f32.mrb[0].mxu0
      %v682 = vadd.f32 0.0, %v681
      %v683 = vpop.f32.mrb[0].mxu0
      %v684 = vpop.f32.mrb[0].mxu0
      %v685 = vadd.f32 0.0, %v684
      %v686 = vpop.f32.mrb[0].mxu0
      %687 = vmatprep.mubr.bf16.mxu0 0
      %688 = vmatmul.mubr.bf16.gmra.mrb[0].mxu0 %v636
      %v689 = vpop.f32.mrb[0].mxu0
      %v690 = vadd.f32 0.0, %v689
      %v691 = vpop.f32.mrb[0].mxu0
      %v692 = vpop.f32.mrb[0].mxu0
      %v693 = vadd.f32 0.0, %v692
      %v694 = vpop.f32.mrb[0].mxu0
      %695 = vmatprep.mubr.bf16.mxu0 0
      %696 = vmatmul.mubr.bf16.gmra.mrb[0].mxu0 %v639
      %v697 = vpop.f32.mrb[0].mxu0
      %v698 = vadd.f32 0.0, %v697
      %v699 = vpop.f32.mrb[0].mxu0
      %v700 = vpop.f32.mrb[0].mxu0
      %v701 = vadd.f32 0.0, %v700
      %v702 = vpop.f32.mrb[0].mxu0
      %703 = vmatprep.mubr.bf16.mxu0 0
      %704 = vmatmul.mubr.bf16.gmra.mrb[0].mxu0 %v642
      %v705 = vpop.f32.mrb[0].mxu0
      %v706 = vadd.f32 0.0, %v705
      %v707 = vpop.f32.mrb[0].mxu0
      %v708 = vpop.f32.mrb[0].mxu0
      %v709 = vadd.f32 0.0, %v708
      %v710 = vpop.f32.mrb[0].mxu0
      %711 = vdwg.mxu0
      %v712 = vadd.f32 %v583, %v682
      %v713 = vadd.f32 %v584, %v685
      %v714 = vadd.f32 %v585, %v690
      %v715 = vadd.f32 %v586, %v693
      %v716 = vadd.f32 %v587, %v698
      %v717 = vadd.f32 %v588, %v701
      %v718 = vadd.f32 %v589, %v706
      %v719 = vadd.f32 %v590, %v709
      %v720 = vld [vmem:[%s207 + $0x8] sm:$0xf]
      %v721 = vld [vmem:[%s207 + $0xc] sm:$0xf]
      %v722 = vld [vmem:[%s207 + $0x10] sm:$0xf]
      %v723 = vld [vmem:[%s207 + $0x14] sm:$0xf]
      %v724 = vld [vmem:[%s207 + $0x18] sm:$0xf]
      %v725 = vld [vmem:[%s207 + $0x1c] sm:$0xf]
      %v726 = vld [vmem:[%s207 + $0x20] sm:$0xf]
      %v727 = vld [vmem:[%s207 + $0x24] sm:$0xf]
      %s728 = scalar_lea.vmem %s2, 48
      %v729 = vld [vmem:[%s728] sm:$0xf]
      %v730 = vld [vmem:[%s728 + $0x4] sm:$0xf]
      %v731 = vld [vmem:[%s728 + $0x8] sm:$0xf]
      %v740 = vunpack.c.l.b16 %v720
      %v741 = vunpack.c.l.b16 %v721
      %v742 = vunpack.c.l.b16 %v722
      %v743 = vunpack.c.l.b16 %v723
      %v744 = vunpack.c.l.b16 %v724
      %v745 = vunpack.c.l.b16 %v725
      %v746 = vunpack.c.l.b16 %v726
      %v747 = vunpack.c.l.b16 %v727
      %v748 = vpack.c.b16 %v741, %v740
      %v749 = vpack.c.b16 %v743, %v742
      %v750 = vpack.c.b16 %v745, %v744
      %v751 = vpack.c.b16 %v747, %v746
      %v755 = vunpack.c.l.b16 %v729
      %v756 = vunpack.c.l.b16 %v730
      %v757 = vunpack.c.l.b16 %v731
      %v758 = vpack.c.b16 %v756, %v755
      %v759 = vpack.c.b16 %v757, %v757
      %v762 = vsel %vm271, %v748, 0
      %v765 = vsel %vm271, %v749, 0
      %v768 = vsel %vm271, %v750, 0
      %v771 = vsel %vm271, %v751, 0
      %v774 = vsel %vm284, %v759, 0
      %776 = vmatprep.subr.bf16.mxu0 0
      %777 = vmatpush1.bf16.msra.mxu0 %v758
      %778 = vmatprep.subr.bf16.mxu0 0
      %779 = vmatpush1.bf16.msra.mxu0 %v774
      %780 = vmatprep.subr.bf16.mxu0 0
      %781 = vmatpush1.bf16.msra.mxu0 0
      %782 = vmatprep.subr.bf16.mxu0 0
      %783 = vmatpush1.bf16.msra.mxu0 0
      %784 = vmatprep.subr.bf16.mxu0 0
      %785 = vmatpush1.bf16.msra.mxu0 0
      %786 = vmatprep.subr.bf16.mxu0 0
      %787 = vmatpush1.bf16.msra.mxu0 0
      %788 = vmatprep.subr.bf16.mxu0 0
      %789 = vmatpush1.bf16.msra.mxu0 0
      %790 = vmatprep.subr.bf16.mxu0 0
      %791 = vmatpush1.bf16.msra.mxu0 0
      %792 = vmatprep.subr.bf16.mxu0 0
      %793 = vmatpush1.bf16.msra.mxu0 0
      %794 = vmatprep.subr.bf16.mxu0 0
      %795 = vmatpush1.bf16.msra.mxu0 0
      %796 = vmatprep.subr.bf16.mxu0 0
      %797 = vmatpush1.bf16.msra.mxu0 0
      %798 = vmatprep.subr.bf16.mxu0 0
      %799 = vmatpush1.bf16.msra.mxu0 0
      %800 = vmatprep.subr.bf16.mxu0 0
      %801 = vmatpush1.bf16.msra.mxu0 0
      %802 = vmatprep.subr.bf16.mxu0 0
      %803 = vmatpush1.bf16.msra.mxu0 0
      %804 = vmatprep.subr.bf16.mxu0 0
      %805 = vmatpush1.bf16.msra.mxu0 0
      %806 = vmatprep.subr.bf16.mxu0 0
      %807 = vmatpush1.bf16.msra.mxu0 0
      %808 = vmatprep.mubr.bf16.mxu0 0
      %809 = vmatmul.mubr.bf16.gmra.mrb[0].mxu0 %v762
      %v810 = vpop.f32.mrb[0].mxu0
      %v811 = vadd.f32 0.0, %v810
      %v812 = vpop.f32.mrb[0].mxu0
      %v813 = vpop.f32.mrb[0].mxu0
      %v814 = vadd.f32 0.0, %v813
      %v815 = vpop.f32.mrb[0].mxu0
      %816 = vmatprep.mubr.bf16.mxu0 0
      %817 = vmatmul.mubr.bf16.gmra.mrb[0].mxu0 %v765
      %v818 = vpop.f32.mrb[0].mxu0
      %v819 = vadd.f32 0.0, %v818
      %v820 = vpop.f32.mrb[0].mxu0
      %v821 = vpop.f32.mrb[0].mxu0
      %v822 = vadd.f32 0.0, %v821
      %v823 = vpop.f32.mrb[0].mxu0
      %824 = vmatprep.mubr.bf16.mxu0 0
      %825 = vmatmul.mubr.bf16.gmra.mrb[0].mxu0 %v768
      %v826 = vpop.f32.mrb[0].mxu0
      %v827 = vadd.f32 0.0, %v826
      %v828 = vpop.f32.mrb[0].mxu0
      %v829 = vpop.f32.mrb[0].mxu0
      %v830 = vadd.f32 0.0, %v829
      %v831 = vpop.f32.mrb[0].mxu0
      %832 = vmatprep.mubr.bf16.mxu0 0
      %833 = vmatmul.mubr.bf16.gmra.mrb[0].mxu0 %v771
      %v834 = vpop.f32.mrb[0].mxu0
      %v835 = vadd.f32 0.0, %v834
      %v836 = vpop.f32.mrb[0].mxu0
      %v837 = vpop.f32.mrb[0].mxu0
      %v838 = vadd.f32 0.0, %v837
      %v839 = vpop.f32.mrb[0].mxu0
      %840 = vdwg.mxu0
      %v841 = vadd.f32 %v712, %v811
      %v842 = vadd.f32 %v713, %v814
      %v843 = vadd.f32 %v714, %v819
      %v844 = vadd.f32 %v715, %v822
      %v845 = vadd.f32 %v716, %v827
      %v846 = vadd.f32 %v717, %v830
      %v847 = vadd.f32 %v718, %v835
      %v848 = vadd.f32 %v719, %v838
      %v849 = vld [vmem:[%s212 + $0x8] sm:$0xf]
      %v850 = vld [vmem:[%s212 + $0xc] sm:$0xf]
      %v851 = vld [vmem:[%s212 + $0x10] sm:$0xf]
      %v852 = vld [vmem:[%s212 + $0x14] sm:$0xf]
      %v853 = vld [vmem:[%s212 + $0x18] sm:$0xf]
      %v854 = vld [vmem:[%s212 + $0x1c] sm:$0xf]
      %v855 = vld [vmem:[%s212 + $0x20] sm:$0xf]
      %v856 = vld [vmem:[%s212 + $0x24] sm:$0xf]
      %s857 = scalar_lea.vmem %s2, 60
      %v858 = vld [vmem:[%s857] sm:$0xf]
      %v859 = vld [vmem:[%s857 + $0x4] sm:$0xf]
      %v860 = vld [vmem:[%s857 + $0x8] sm:$0xf]
      %v869 = vunpack.c.l.b16 %v849
      %v870 = vunpack.c.l.b16 %v850
      %v871 = vunpack.c.l.b16 %v851
      %v872 = vunpack.c.l.b16 %v852
      %v873 = vunpack.c.l.b16 %v853
      %v874 = vunpack.c.l.b16 %v854
      %v875 = vunpack.c.l.b16 %v855
      %v876 = vunpack.c.l.b16 %v856
      %v877 = vpack.c.b16 %v870, %v869
      %v878 = vpack.c.b16 %v872, %v871
      %v879 = vpack.c.b16 %v874, %v873
      %v880 = vpack.c.b16 %v876, %v875
      %v884 = vunpack.c.l.b16 %v858
      %v885 = vunpack.c.l.b16 %v859
      %v886 = vunpack.c.l.b16 %v860
      %v887 = vpack.c.b16 %v885, %v884
      %v888 = vpack.c.b16 %v886, %v886
      %v891 = vsel %vm271, %v877, 0
      %v894 = vsel %vm271, %v878, 0
      %v897 = vsel %vm271, %v879, 0
      %v900 = vsel %vm271, %v880, 0
      %v903 = vsel %vm284, %v888, 0
      %905 = vmatprep.subr.bf16.mxu0 0
      %906 = vmatpush1.bf16.msra.mxu0 %v887
      %907 = vmatprep.subr.bf16.mxu0 0
      %908 = vmatpush1.bf16.msra.mxu0 %v903
      %909 = vmatprep.subr.bf16.mxu0 0
      %910 = vmatpush1.bf16.msra.mxu0 0
      %911 = vmatprep.subr.bf16.mxu0 0
      %912 = vmatpush1.bf16.msra.mxu0 0
      %913 = vmatprep.subr.bf16.mxu0 0
      %914 = vmatpush1.bf16.msra.mxu0 0
      %915 = vmatprep.subr.bf16.mxu0 0
      %916 = vmatpush1.bf16.msra.mxu0 0
      %917 = vmatprep.subr.bf16.mxu0 0
      %918 = vmatpush1.bf16.msra.mxu0 0
      %919 = vmatprep.subr.bf16.mxu0 0
      %920 = vmatpush1.bf16.msra.mxu0 0
      %921 = vmatprep.subr.bf16.mxu0 0
      %922 = vmatpush1.bf16.msra.mxu0 0
      %923 = vmatprep.subr.bf16.mxu0 0
      %924 = vmatpush1.bf16.msra.mxu0 0
      %925 = vmatprep.subr.bf16.mxu0 0
      %926 = vmatpush1.bf16.msra.mxu0 0
      %927 = vmatprep.subr.bf16.mxu0 0
      %928 = vmatpush1.bf16.msra.mxu0 0
      %929 = vmatprep.subr.bf16.mxu0 0
      %930 = vmatpush1.bf16.msra.mxu0 0
      %931 = vmatprep.subr.bf16.mxu0 0
      %932 = vmatpush1.bf16.msra.mxu0 0
      %933 = vmatprep.subr.bf16.mxu0 0
      %934 = vmatpush1.bf16.msra.mxu0 0
      %935 = vmatprep.subr.bf16.mxu0 0
      %936 = vmatpush1.bf16.msra.mxu0 0
      %937 = vmatprep.mubr.bf16.mxu0 0
      %938 = vmatmul.mubr.bf16.gmra.mrb[0].mxu0 %v891
      %v939 = vpop.f32.mrb[0].mxu0
      %v940 = vadd.f32 0.0, %v939
      %v941 = vpop.f32.mrb[0].mxu0
      %v942 = vpop.f32.mrb[0].mxu0
      %v943 = vadd.f32 0.0, %v942
      %v944 = vpop.f32.mrb[0].mxu0
      %945 = vmatprep.mubr.bf16.mxu0 0
      %946 = vmatmul.mubr.bf16.gmra.mrb[0].mxu0 %v894
      %v947 = vpop.f32.mrb[0].mxu0
      %v948 = vadd.f32 0.0, %v947
      %v949 = vpop.f32.mrb[0].mxu0
      %v950 = vpop.f32.mrb[0].mxu0
      %v951 = vadd.f32 0.0, %v950
      %v952 = vpop.f32.mrb[0].mxu0
      %953 = vmatprep.mubr.bf16.mxu0 0
      %954 = vmatmul.mubr.bf16.gmra.mrb[0].mxu0 %v897
      %v955 = vpop.f32.mrb[0].mxu0
      %v956 = vadd.f32 0.0, %v955
      %v957 = vpop.f32.mrb[0].mxu0
      %v958 = vpop.f32.mrb[0].mxu0
      %v959 = vadd.f32 0.0, %v958
      %v960 = vpop.f32.mrb[0].mxu0
      %961 = vmatprep.mubr.bf16.mxu0 0
      %962 = vmatmul.mubr.bf16.gmra.mrb[0].mxu0 %v900
      %v963 = vpop.f32.mrb[0].mxu0
      %v964 = vadd.f32 0.0, %v963
      %v965 = vpop.f32.mrb[0].mxu0
      %v966 = vpop.f32.mrb[0].mxu0
      %v967 = vadd.f32 0.0, %v966
      %v968 = vpop.f32.mrb[0].mxu0
      %969 = vdwg.mxu0
      %v970 = vadd.f32 %v841, %v940
      %v971 = vadd.f32 %v842, %v943
      %v972 = vadd.f32 %v843, %v948
      %v973 = vadd.f32 %v844, %v951
      %v974 = vadd.f32 %v845, %v956
      %v975 = vadd.f32 %v846, %v959
      %v976 = vadd.f32 %v847, %v964
      %v977 = vadd.f32 %v848, %v967
      %v978 = vld [vmem:[%s207 + $0xc] sm:$0xf]
      %v979 = vld [vmem:[%s207 + $0x10] sm:$0xf]
      %v980 = vld [vmem:[%s207 + $0x14] sm:$0xf]
      %v981 = vld [vmem:[%s207 + $0x18] sm:$0xf]
      %v982 = vld [vmem:[%s207 + $0x1c] sm:$0xf]
      %v983 = vld [vmem:[%s207 + $0x20] sm:$0xf]
      %v984 = vld [vmem:[%s207 + $0x24] sm:$0xf]
      %v985 = vld [vmem:[%s207 + $0x28] sm:$0xf]
      %s986 = scalar_lea.vmem %s2, 72
      %v987 = vld [vmem:[%s986] sm:$0xf]
      %v988 = vld [vmem:[%s986 + $0x4] sm:$0xf]
      %v989 = vld [vmem:[%s986 + $0x8] sm:$0xf]
      %v998 = vunpack.c.l.b16 %v978
      %v999 = vunpack.c.l.b16 %v979
      %v1000 = vunpack.c.l.b16 %v980
      %v1001 = vunpack.c.l.b16 %v981
      %v1002 = vunpack.c.l.b16 %v982
      %v1003 = vunpack.c.l.b16 %v983
      %v1004 = vunpack.c.l.b16 %v984
      %v1005 = vunpack.c.l.b16 %v985
      %v1006 = vpack.c.b16 %v999, %v998
      %v1007 = vpack.c.b16 %v1001, %v1000
      %v1008 = vpack.c.b16 %v1003, %v1002
      %v1009 = vpack.c.b16 %v1005, %v1004
      %v1013 = vunpack.c.l.b16 %v987
      %v1014 = vunpack.c.l.b16 %v988
      %v1015 = vunpack.c.l.b16 %v989
      %v1016 = vpack.c.b16 %v1014, %v1013
      %v1017 = vpack.c.b16 %v1015, %v1015
      %v1020 = vsel %vm271, %v1006, 0
      %v1023 = vsel %vm271, %v1007, 0
      %v1026 = vsel %vm271, %v1008, 0
      %v1029 = vsel %vm271, %v1009, 0
      %v1032 = vsel %vm284, %v1017, 0
      %1034 = vmatprep.subr.bf16.mxu0 0
      %1035 = vmatpush1.bf16.msra.mxu0 %v1016
      %1036 = vmatprep.subr.bf16.mxu0 0
      %1037 = vmatpush1.bf16.msra.mxu0 %v1032
      %1038 = vmatprep.subr.bf16.mxu0 0
      %1039 = vmatpush1.bf16.msra.mxu0 0
      %1040 = vmatprep.subr.bf16.mxu0 0
      %1041 = vmatpush1.bf16.msra.mxu0 0
      %1042 = vmatprep.subr.bf16.mxu0 0
      %1043 = vmatpush1.bf16.msra.mxu0 0
      %1044 = vmatprep.subr.bf16.mxu0 0
      %1045 = vmatpush1.bf16.msra.mxu0 0
      %1046 = vmatprep.subr.bf16.mxu0 0
      %1047 = vmatpush1.bf16.msra.mxu0 0
      %1048 = vmatprep.subr.bf16.mxu0 0
      %1049 = vmatpush1.bf16.msra.mxu0 0
      %1050 = vmatprep.subr.bf16.mxu0 0
      %1051 = vmatpush1.bf16.msra.mxu0 0
      %1052 = vmatprep.subr.bf16.mxu0 0
      %1053 = vmatpush1.bf16.msra.mxu0 0
      %1054 = vmatprep.subr.bf16.mxu0 0
      %1055 = vmatpush1.bf16.msra.mxu0 0
      %1056 = vmatprep.subr.bf16.mxu0 0
      %1057 = vmatpush1.bf16.msra.mxu0 0
      %1058 = vmatprep.subr.bf16.mxu0 0
      %1059 = vmatpush1.bf16.msra.mxu0 0
      %1060 = vmatprep.subr.bf16.mxu0 0
      %1061 = vmatpush1.bf16.msra.mxu0 0
      %1062 = vmatprep.subr.bf16.mxu0 0
      %1063 = vmatpush1.bf16.msra.mxu0 0
      %1064 = vmatprep.subr.bf16.mxu0 0
      %1065 = vmatpush1.bf16.msra.mxu0 0
      %1066 = vmatprep.mubr.bf16.mxu0 0
      %1067 = vmatmul.mubr.bf16.gmra.mrb[0].mxu0 %v1020
      %v1068 = vpop.f32.mrb[0].mxu0
      %v1069 = vadd.f32 0.0, %v1068
      %v1070 = vpop.f32.mrb[0].mxu0
      %v1071 = vpop.f32.mrb[0].mxu0
      %v1072 = vadd.f32 0.0, %v1071
      %v1073 = vpop.f32.mrb[0].mxu0
      %1074 = vmatprep.mubr.bf16.mxu0 0
      %1075 = vmatmul.mubr.bf16.gmra.mrb[0].mxu0 %v1023
      %v1076 = vpop.f32.mrb[0].mxu0
      %v1077 = vadd.f32 0.0, %v1076
      %v1078 = vpop.f32.mrb[0].mxu0
      %v1079 = vpop.f32.mrb[0].mxu0
      %v1080 = vadd.f32 0.0, %v1079
      %v1081 = vpop.f32.mrb[0].mxu0
      %1082 = vmatprep.mubr.bf16.mxu0 0
      %1083 = vmatmul.mubr.bf16.gmra.mrb[0].mxu0 %v1026
      %v1084 = vpop.f32.mrb[0].mxu0
      %v1085 = vadd.f32 0.0, %v1084
      %v1086 = vpop.f32.mrb[0].mxu0
      %v1087 = vpop.f32.mrb[0].mxu0
      %v1088 = vadd.f32 0.0, %v1087
      %v1089 = vpop.f32.mrb[0].mxu0
      %1090 = vmatprep.mubr.bf16.mxu0 0
      %1091 = vmatmul.mubr.bf16.gmra.mrb[0].mxu0 %v1029
      %v1092 = vpop.f32.mrb[0].mxu0
      %v1093 = vadd.f32 0.0, %v1092
      %v1094 = vpop.f32.mrb[0].mxu0
      %v1095 = vpop.f32.mrb[0].mxu0
      %v1096 = vadd.f32 0.0, %v1095
      %v1097 = vpop.f32.mrb[0].mxu0
      %1098 = vdwg.mxu0
      %v1099 = vadd.f32 %v970, %v1069
      %v1100 = vadd.f32 %v971, %v1072
      %v1101 = vadd.f32 %v972, %v1077
      %v1102 = vadd.f32 %v973, %v1080
      %v1103 = vadd.f32 %v974, %v1085
      %v1104 = vadd.f32 %v975, %v1088
      %v1105 = vadd.f32 %v976, %v1093
      %v1106 = vadd.f32 %v977, %v1096
      %v1107 = vld [vmem:[%s3] sm:$0x1]
      %v1109 = vlaneseq
      %v1110 = vshrl.u32 %v1109, 7
      %v1111 = vsub.s32 0, %v1110
      %v1112 = vrot.slane %v1107, %v1111
      %v1114 = vadd.f32 %v1099, %v1112
      %v1115 = vadd.f32 %v1100, %v1112
      %v1116 = vadd.f32 %v1101, %v1112
      %v1117 = vadd.f32 %v1102, %v1112
      %v1118 = vadd.f32 %v1103, %v1112
      %v1119 = vadd.f32 %v1104, %v1112
      %v1120 = vadd.f32 %v1105, %v1112
      %v1121 = vadd.f32 %v1106, %v1112
      %v1122 = vmax.f32 %v1114, 0.0
      %v1123 = vmax.f32 %v1115, 0.0
      %v1124 = vmax.f32 %v1116, 0.0
      %v1125 = vmax.f32 %v1117, 0.0
      %v1126 = vmax.f32 %v1118, 0.0
      %v1127 = vmax.f32 %v1119, 0.0
      %v1128 = vmax.f32 %v1120, 0.0
      %v1129 = vmax.f32 %v1121, 0.0
      %1130 = vst [vmem:[#allocation2] sm:$0xff] 0.0
      %s1131 = scalar_lea.vmem [#allocation2], 8
      %1132 = vst [vmem:[%s1131] sm:$0xff] %v1122
      %1133 = vst [vmem:[%s1131 + $0x8] sm:$0xff] %v1123
      %1134 = vst [vmem:[%s1131 + $0x10] sm:$0xff] %v1124
      %1135 = vst [vmem:[%s1131 + $0x18] sm:$0xff] %v1125
      %1136 = vst [vmem:[%s1131 + $0x20] sm:$0xff] %v1126
      %1137 = vst [vmem:[%s1131 + $0x28] sm:$0xff] %v1127
      %1138 = vst [vmem:[%s1131 + $0x30] sm:$0xff] %v1128
      %1139 = vst [vmem:[%s1131 + $0x38] sm:$0xff] %v1129
      %v1140 = vld [vmem:[#allocation2] sm:$0xff]
      %v1141 = vld [vmem:[#allocation2 + $0x10] sm:$0xff]
      %v1142 = vld [vmem:[#allocation2 + $0x20] sm:$0xff]
      %v1143 = vld [vmem:[#allocation2 + $0x30] sm:$0xff]
      %v1144 = vld [vmem:[%s1131] sm:$0xff]
      %v1145 = vld [vmem:[%s1131 + $0x10] sm:$0xff]
      %v1146 = vld [vmem:[%s1131 + $0x20] sm:$0xff]
      %v1147 = vld [vmem:[%s1131 + $0x30] sm:$0xff]
      %v1148 = vmax.f32 %v1140, %v1144
      %v1149 = vmax.f32 %v1141, %v1145
      %v1150 = vmax.f32 %v1142, %v1146
      %v1151 = vmax.f32 %v1143, %v1147
      %s1152 = scalar_lea.vmem [#allocation2], 16
      %v1153 = vld [vmem:[%s1152] sm:$0xff]
      %v1154 = vld [vmem:[%s1152 + $0x10] sm:$0xff]
      %v1155 = vld [vmem:[%s1152 + $0x20] sm:$0xff]
      %v1156 = vld [vmem:[%s1152 + $0x30] sm:$0xff]
      %v1157 = vmax.f32 %v1148, %v1153
      %v1158 = vmax.f32 %v1149, %v1154
      %v1159 = vmax.f32 %v1150, %v1155
      %v1160 = vmax.f32 %v1151, %v1156
      %1161 = vst [vmem:[#allocation3] sm:$0xff] 0.0
      %1162 = vst [vmem:[#allocation3 + $0x10] sm:$0xff] 0.0
      %1163 = vst [vmem:[#allocation3 + $0x20] sm:$0xff] 0.0
      %1164 = vst [vmem:[#allocation3 + $0x30] sm:$0xff] 0.0
      %1165 = vst [vmem:[#allocation3 + $0x8] sm:$0xff] %v1157
      %1166 = vst [vmem:[#allocation3 + $0x18] sm:$0xff] %v1158
      %1167 = vst [vmem:[#allocation3 + $0x28] sm:$0xff] %v1159
      %1168 = vst [vmem:[#allocation3 + $0x38] sm:$0xff] %v1160
      %s1169 = scalar_lea.vmem [#allocation3], 7
      %v1170 = vld [vmem:[%s1169] ss:$2 sm:$0xf]
      %s1171 = scalar_lea.vmem [#allocation3], 23
      %v1172 = vld [vmem:[%s1171] ss:$2 sm:$0xf]
      %s1173 = scalar_lea.vmem [#allocation3], 39
      %v1174 = vld [vmem:[%s1173] ss:$2 sm:$0xf]
      %s1175 = scalar_lea.vmem [#allocation3], 55
      %v1176 = vld [vmem:[%s1175] ss:$2 sm:$0xf]
      %s1177 = scalar_lea.vmem [#allocation3], 8
      %v1178 = vld [vmem:[%s1177] ss:$2 sm:$0xf]
      %s1179 = scalar_lea.vmem [#allocation3], 24
      %v1180 = vld [vmem:[%s1179] ss:$2 sm:$0xf]
      %s1181 = scalar_lea.vmem [#allocation3], 40
      %v1182 = vld [vmem:[%s1181] ss:$2 sm:$0xf]
      %s1183 = scalar_lea.vmem [#allocation3], 56
      %v1184 = vld [vmem:[%s1183] ss:$2 sm:$0xf]
      %v1185 = vmax.f32 %v1170, %v1178
      %v1186 = vmax.f32 %v1172, %v1180
      %v1187 = vmax.f32 %v1174, %v1182
      %v1188 = vmax.f32 %v1176, %v1184
      %s1189 = scalar_lea.vmem [#allocation3], 9
      %v1190 = vld [vmem:[%s1189] ss:$2 sm:$0xf]
      %s1191 = scalar_lea.vmem [#allocation3], 25
      %v1192 = vld [vmem:[%s1191] ss:$2 sm:$0xf]
      %s1193 = scalar_lea.vmem [#allocation3], 41
      %v1194 = vld [vmem:[%s1193] ss:$2 sm:$0xf]
      %s1195 = scalar_lea.vmem [#allocation3], 57
      %v1196 = vld [vmem:[%s1195] ss:$2 sm:$0xf]
      %v1197 = vmax.f32 %v1185, %v1190
      %v1198 = vmax.f32 %v1186, %v1192
      %v1199 = vmax.f32 %v1187, %v1194
      %v1200 = vmax.f32 %v1188, %v1196
      %1201 = vst [vmem:[%s217] sm:$0xf] %v1197
      %1202 = vst [vmem:[%s217 + $0x4] sm:$0xf] %v1198
      %1203 = vst [vmem:[%s217 + $0x8] sm:$0xf] %v1199
      %1204 = vst [vmem:[%s217 + $0xc] sm:$0xf] %v1200
      %p1205 = scmp.lt.s32.totalorder %s15, 1
      %s1206 = scalar_select %p1205, %s15, 1
      %s1207 = smul.addr %s1206, 4
      %s1208 = smul.addr %s1207, 4
      %s1209 = scalar_lea.vmem %s4, %s1208
      // Predicated region
      $region37: #{thermal_module_forward.1} parent=35 // pred_check
        %p1210 = pneg %p127
      $region38: #{thermal_module_forward.1} parent=35 // pred_check_branch
        %1212 = sbr.rel (%p1210) target = $region40
      $region39: #{thermal_module_forward.1} parent=35 // pred_region
        _
      $region40: #{thermal_module_forward.1} parent=35 // pred_fallthru
        _
    $region36: #{thermal_module_forward.1} parent=5 // pred_fallthru
      _
    %p1213 = scmp.le.s32.totalorder 2, %s10
    // Predicated region
    $region41: #{thermal_module_forward.1} parent=5 // pred_check
      %p1214 = pneg %p1213
    $region42: #{thermal_module_forward.1} parent=5 // pred_check_branch
      %1216 = sbr.rel (%p1214) target = $region44
    $region43: #{thermal_module_forward.1} parent=5 // pred_region
      %s1217 = ssub.s32 %s10, 2
      // Predicated region
      $region45: #{thermal_module_forward.1} parent=43 // pred_check
        %p1218 = pneg %p133
      $region46: #{thermal_module_forward.1} parent=43 // pred_check_branch
        %1220 = sbr.rel (%p1218) target = $region48
      $region47: #{thermal_module_forward.1} parent=43 // pred_region
        %p1221 = scmp.lt.s32.totalorder %s16, 1
        %s1222 = scalar_select %p1221, %s16, 1
        %s1223 = smul.addr %s1222, 4
        %s1224 = smul.addr %s1223, 4
        %s1225 = scalar_lea.vmem %s4, %s1224
      $region48: #{thermal_module_forward.1} parent=43 // pred_fallthru
        _
    $region44: #{thermal_module_forward.1} parent=5 // pred_fallthru
      _
  $region6: #{thermal_module_forward.1} parent=0 // loop_footer
    %s14 = sadd.s32 1, %s10
  $region7: #{thermal_module_forward.1} parent=0 // loop_footer_branch
    %9 = sbr.rel target = $region3
  $region8: #{thermal_module_forward.1} parent=0 // loop_exit
    _

</llo_original>
